<compile_context>
chip_gen: v5e
topology: v5e:2x2
jax: 0.10.0
libtpu: 0.0.40
codegen_flags: <defaults>
</compile_context>

<pallas_src>
import functools
import warnings

import jax
import jax.numpy as jnp
from jax.experimental import pallas as pl
from jax.experimental.pallas import tpu as pltpu


# --------------------------------------------------------------------------- #
# Kernel                                                                      #
# --------------------------------------------------------------------------- #
def _make_renderer_kernel(write_full_rgba: bool, to_uint8: bool):
    """Fused tensor2rgba + _write_images compositing, channel-planar tiles.

    img_ref      : (1, 4, TH, W)  rendered RGBA planes (VMEM)
    bg_ref       : (1, 3, TH, W)  background planes (VMEM)
    inv_scale_ref: (1,)           1 / image_max (SMEM scalar)
    rgba_out_ref : (1, 4, TH, W)  full rgba output                (write_full_rgba)
                   (1, 1, TH, W)  alpha/mask plane only, rgb carried via alias
    out_ref      : (1, 3, TH, W)  composited BGR planes
    """

    def kernel(img_ref, bg_ref, inv_scale_ref, rgba_out_ref, out_ref):
        alpha = img_ref[0, 3].astype(jnp.float32)      # (TH, W), lane-dense
        keep = alpha > 0.0

        # --- tensor2rgba -----------------------------------------------------
        if write_full_rgba:
            for c in range(3):
                rgba_out_ref[0, c] = img_ref[0, c].astype(rgba_out_ref.dtype)
            rgba_out_ref[0, 3] = keep.astype(rgba_out_ref.dtype)
        else:
            # rgb planes come from the input->output alias (no re-write).
            rgba_out_ref[0, 0] = keep.astype(rgba_out_ref.dtype)

        # --- _write_images: clip, rgb->bgr (index permutation), normalize
        # background, composite via select.  Static 3-iteration loop unrolls
        # at trace time; every store is a dense (TH, W) plane.
        inv_scale = inv_scale_ref[0]
        for c in range(3):
            fg = jnp.clip(img_ref[0, 2 - c].astype(jnp.float32), 0.0, 1.0)
            bg = bg_ref[0, c].astype(jnp.float32) * inv_scale
            val = jnp.where(keep, fg, bg)
            if to_uint8:
                val = jnp.clip(jnp.round(val * 255.0), 0.0, 255.0)
            out_ref[0, c] = val.astype(out_ref.dtype)

    return kernel


# --------------------------------------------------------------------------- #
# Tiling / VMEM heuristics                                                    #
# --------------------------------------------------------------------------- #
def _vmem_capacity_bytes():
    try:
        return int(getattr(pltpu.get_tpu_info(), "vmem_capacity_bytes", 64 << 20))
    except Exception:  # pragma: no cover - conservative fallback (v7x size)
        return 64 << 20


def _choose_tile_h(H, bytes_per_row, budget_bytes, B, min_total_blocks=8):
    """Largest sublane-aligned row tile whose double-buffered working set fits
    the budget, capped so both TensorCores get work, preferring a divisor of H."""
    if H <= 8:
        return H
    th = int(min(H, max(8, budget_bytes // max(1, bytes_per_row))))
    th = max(8, (th // 8) * 8)
    # Megacore: keep enough row tiles so both v7x TensorCores have work.
    blocks_per_batch = -(-min_total_blocks // max(1, B))
    if blocks_per_batch > 1:
        cap = max(8, ((H // blocks_per_batch) // 8) * 8)
        th = min(th, cap)
    # Prefer a tile height dividing H (no ragged masked last tile), but never
    # shrink by more than ~64 rows for it.
    if H % th != 0:
        for cand in range(th - 8, max(7, th - 64), -8):
            if cand > 0 and H % cand == 0:
                th = cand
                break
    return int(min(th, H))


# --------------------------------------------------------------------------- #
# Wrapper                                                                     #
# --------------------------------------------------------------------------- #
def base_renderer_forward(rgba, backgrounds, *, image_max=None,
                          out_dtype=jnp.bfloat16, donate_rgba=False,
                          tile_h=None, vmem_budget_bytes=None):
    """Channel-planar BaseRenderer math.

    rgba        : (B, 4, H, W)  module's NHWC render permuted to planar.
    backgrounds : (B, 3, H, W)
    image_max   : pass 1.0 (float bg) or 255.0 (uint8-range bg) explicitly;
                  the None fallback does an extra full HBM pass (warned).
    out_dtype   : composited-image dtype (default bf16; uint8 = scale*255).
    donate_rgba : set True ONLY when the caller donates `rgba`
                  (jax.jit(..., donate_argnums=...)); enables the aliased
                  mask-plane-only write.  If the buffer is not actually
                  donatable the result is still correct (XLA inserts a copy).

    Returns (rgba_out, output_images); rgba_out = [rgb, (alpha>0)*1.0] and
    output_images = the composited BGR image fed to cv2.imwrite.
    """
    B, C, H, W = rgba.shape
    assert C == 4 and backgrounds.shape == (B, 3, H, W)

    if image_max is None:
        warnings.warn(
            "base_renderer_forward: image_max=None triggers a full reduction "
            "over `backgrounds` (extra HBM pass). Pass image_max explicitly.")
        image_max = jnp.where(jnp.max(backgrounds) <= 1.0, 1.0, 255.0)
    inv_scale = (1.0 / jnp.asarray(image_max, jnp.float32)).reshape(1)

    # ---- lane-dense padding of W (unmasked full-lane stores) ---------------
    w_pad_to = max(128, ((W + 127) // 128) * 128)
    pad = w_pad_to - W
    if pad:
        rgba_k = jnp.pad(rgba, ((0, 0), (0, 0), (0, 0), (0, pad)))
        bg_k = jnp.pad(backgrounds, ((0, 0), (0, 0), (0, 0), (0, pad)))
    else:
        rgba_k, bg_k = rgba, backgrounds
    Wk = w_pad_to

    # Aliased mask-only write only pays off when no padding/slicing is needed
    # and the caller actually donates the buffer.
    use_alias = bool(donate_rgba) and pad == 0
    write_full_rgba = not use_alias
    to_uint8 = jnp.dtype(out_dtype) == jnp.dtype(jnp.uint8)

    # ---- VMEM-budgeted row tiling, clamped to the chip ---------------------
    in_item = jnp.dtype(rgba.dtype).itemsize
    bg_item = jnp.dtype(backgrounds.dtype).itemsize
    out_item = jnp.dtype(out_dtype).itemsize
    rgba_out_planes = 4 if write_full_rgba else 1
    bytes_per_row = 2 * Wk * (4 * in_item + 3 * bg_item
                              + rgba_out_planes * in_item + 3 * out_item)

    vmem_cap = _vmem_capacity_bytes()
    hw_budget = int(0.4 * vmem_cap)                    # <=40% of per-TC VMEM
    if vmem_budget_bytes is None:
        vmem_budget_bytes = hw_budget
    vmem_budget_bytes = min(int(vmem_budget_bytes), hw_budget)

    if tile_h is None:
        tile_h = _choose_tile_h(H, bytes_per_row, vmem_budget_bytes, B)
    tile_h = int(min(max(1, tile_h), H))

    working_set = bytes_per_row * tile_h
    vmem_limit = max(32 << 20, working_set + (16 << 20))
    vmem_limit = min(vmem_limit, max(vmem_cap - (8 << 20),
                                     working_set + (4 << 20)))

    grid = (B, pl.cdiv(H, tile_h))

    if write_full_rgba:
        rgba_out_spec = pl.BlockSpec((1, 4, tile_h, Wk), lambda b, h: (b, 0, h, 0))
    else:
        # Only the alpha/mask plane (channel 3) is written back; rgb planes
        # are preserved through the input->output alias.
        rgba_out_spec = pl.BlockSpec((1, 1, tile_h, Wk), lambda b, h: (b, 3, h, 0))

    kernel = _make_renderer_kernel(write_full_rgba, to_uint8)
    rgba_out, out_img = pl.pallas_call(
        kernel,
        grid=grid,
        in_specs=[
            pl.BlockSpec((1, 4, tile_h, Wk), lambda b, h: (b, 0, h, 0)),
            pl.BlockSpec((1, 3, tile_h, Wk), lambda b, h: (b, 0, h, 0)),
            pl.BlockSpec(memory_space=pltpu.MemorySpace.SMEM),
        ],
        out_specs=[
            rgba_out_spec,
            pl.BlockSpec((1, 3, tile_h, Wk), lambda b, h: (b, 0, h, 0)),
        ],
        out_shape=[
            jax.ShapeDtypeStruct((B, 4, H, Wk), rgba.dtype),
            jax.ShapeDtypeStruct((B, 3, H, Wk), out_dtype),
        ],
        input_output_aliases={0: 0} if use_alias else {},
        compiler_params=pltpu.CompilerParams(
            dimension_semantics=("parallel", "parallel"),
            vmem_limit_bytes=int(vmem_limit),
        ),
    )(rgba_k, bg_k, inv_scale)

    if pad:
        rgba_out = rgba_out[..., :W]
        out_img = out_img[..., :W]
    return rgba_out, out_img


# --------------------------------------------------------------------------- #
# Pure-JAX reference of the PyTorch semantics (channel-planar layout)         #
# --------------------------------------------------------------------------- #
def _reference(rgba, backgrounds):
    rgb = rgba[:, :3]
    alpha = rgba[:, 3:4]
    mask = (alpha > 0).astype(jnp.float32)
    rgba_out = jnp.concatenate([rgb, mask], axis=1)

    rgb_c = jnp.clip(rgb, 0.0, 1.0)
    bgr = rgb_c[:, ::-1]
    image_max = jnp.where(jnp.max(backgrounds) <= 1.0, 1.0, 255.0)
    bg = backgrounds / image_max
    out = bgr * mask + (1.0 - mask) * bg
    return rgba_out, out


if __name__ == "__main__":
    # Benign: if XLA cannot reuse a donated buffer it only warns; keep stderr clean.
    warnings.filterwarnings("ignore", message="Some donated buffers were not usable")

    key = jax.random.PRNGKey(0)
    k1, k2, k3 = jax.random.split(key, 3)

    # Channel-planar (B, C, H, W): the module's NHWC images permuted with
    # moveaxis(-1, 1).  W is the lane dimension.
    B, H, W = 2, 16, 128
    # RGB in ~[-0.2, 1.2] (exercises clipping); alpha in [-0.5, 1.0]
    # (exercises the > 0 mask); background in [0, 255] (image_max = 255 path).
    rgb = jax.random.uniform(k1, (B, 3, H, W), jnp.float32, -0.2, 1.2)
    alpha = jax.random.uniform(k2, (B, 1, H, W), jnp.float32, -0.5, 1.0)
    tensor = jnp.concatenate([rgb, alpha], axis=1)
    backgrounds = jax.random.uniform(k3, (B, 3, H, W), jnp.float32, 0.0, 255.0)

    rgba_ref, out_ref = _reference(tensor, backgrounds)

    # --- Run 1: default (non-donated) path, f32 output, tight tolerance. ----
    rgba_out, out_img = base_renderer_forward(
        tensor, backgrounds, image_max=255.0, out_dtype=jnp.float32, tile_h=8)
    jax.block_until_ready((rgba_out, out_img))
    assert jnp.allclose(rgba_out, rgba_ref, atol=1e-5), "rgba mismatch (run 1)"
    assert jnp.allclose(out_img, out_ref, atol=1e-5), "composite mismatch (run 1)"

    # --- Run 2: donated/aliased mask-only write, default bf16 composite. ----
    fwd = jax.jit(
        functools.partial(base_renderer_forward, image_max=255.0,
                          donate_rgba=True, tile_h=8),
        donate_argnums=(0,))
    rgba_out2, out_img2 = fwd(tensor, backgrounds)   # `tensor` donated here
    jax.block_until_ready((rgba_out2, out_img2))
    assert jnp.allclose(rgba_out2, rgba_ref, atol=1e-5), "rgba mismatch (run 2)"
    assert jnp.allclose(out_img2.astype(jnp.float32), out_ref, atol=1e-2), \
        "composite mismatch (run 2, bf16)"

    # --- Run 3: ragged last row-tile with the aliased write (targeted check
    # that the un-written rgb planes survive a masked partial writeback). ----
    k4, k5, k6 = jax.random.split(jax.random.PRNGKey(1), 3)
    H2 = 24                                             # not a multiple of 16
    rgb2 = jax.random.uniform(k4, (1, 3, H2, W), jnp.float32, -0.2, 1.2)
    a2 = jax.random.uniform(k5, (1, 1, H2, W), jnp.float32, -0.5, 1.0)
    t2 = jnp.concatenate([rgb2, a2], axis=1)
    bg2 = jax.random.uniform(k6, (1, 3, H2, W), jnp.float32, 0.0, 1.0)
    rgba_ref2, out_ref2 = _reference(t2, bg2)
    fwd2 = jax.jit(
        functools.partial(base_renderer_forward, image_max=1.0,
                          donate_rgba=True, tile_h=16, out_dtype=jnp.float32),
        donate_argnums=(0,))
    r2, o2 = fwd2(t2, bg2)                              # `t2` donated here
    jax.block_until_ready((r2, o2))
    assert jnp.allclose(r2, rgba_ref2, atol=1e-5), "rgba mismatch (run 3)"
    assert jnp.allclose(o2, out_ref2, atol=1e-5), "composite mismatch (run 3)"

    # TODO(synk): cv2.imwrite / images_to_video / gif export and temp-dir
    # handling from _write_images/export() are host-side file I/O with no
    # Pallas equivalent and are intentionally omitted.
    print("KERNEL_OK")
</pallas_src>

<mosaic_0001>
module attributes {stable_mosaic.version = 11 : i64} {
  func.func @kernel(%arg0: i32, %arg1: i32, %arg2: memref<1x4x8x128xf32, #tpu.memory_space<vmem>>, %arg3: memref<1x3x8x128xf32, #tpu.memory_space<vmem>>, %arg4: memref<1xf32, #tpu.memory_space<smem>>, %arg5: memref<1x4x8x128xf32, #tpu.memory_space<vmem>>, %arg6: memref<1x3x8x128xf32, #tpu.memory_space<vmem>>) attributes {dimension_semantics = [#tpu.dimension_semantics<parallel>, #tpu.dimension_semantics<parallel>], iteration_bounds = array<i64: 2, 2>, scalar_prefetch = 0 : i64, scratch_operands = 0 : i64, tpu.core_type = #tpu.core_type<tc>, window_params = [{transform_indices = @transform_0, window_bounds = array<i64: 1, 4, 8, 128>}, {transform_indices = @transform_1, window_bounds = array<i64: 1, 3, 8, 128>}, {transform_indices = @transform_2, window_bounds = array<i64: 1>}, {transform_indices = @transform_3, window_bounds = array<i64: 1, 4, 8, 128>}, {transform_indices = @transform_4, window_bounds = array<i64: 1, 3, 8, 128>}]} {
    %c0 = arith.constant 0 : index
    %c3 = arith.constant 3 : index
    %c0_0 = arith.constant 0 : index
    %c0_1 = arith.constant 0 : index
    %0 = vector.load %arg2[%c0, %c3, %c0_0, %c0_1] : memref<1x4x8x128xf32, #tpu.memory_space<vmem>>, vector<1x1x8x128xf32>
    %1 = vector.shape_cast %0 : vector<1x1x8x128xf32> to vector<8x128xf32>
    %cst = arith.constant 0.000000e+00 : f32
    %2 = vector.broadcast %cst : f32 to vector<8x128xf32>
    %3 = arith.cmpf ogt, %1, %2 : vector<8x128xf32>
    %c0_2 = arith.constant 0 : index
    %c0_3 = arith.constant 0 : index
    %c0_4 = arith.constant 0 : index
    %c0_5 = arith.constant 0 : index
    %4 = vector.load %arg2[%c0_2, %c0_3, %c0_4, %c0_5] : memref<1x4x8x128xf32, #tpu.memory_space<vmem>>, vector<1x1x8x128xf32>
    %5 = vector.shape_cast %4 : vector<1x1x8x128xf32> to vector<8x128xf32>
    %c0_6 = arith.constant 0 : index
    %c0_7 = arith.constant 0 : index
    %c0_8 = arith.constant 0 : index
    %c0_9 = arith.constant 0 : index
    %6 = vector.load %arg5[%c0_6, %c0_7, %c0_8, %c0_9] : memref<1x4x8x128xf32, #tpu.memory_space<vmem>>, vector<1x1x8x128xf32>
    %7 = vector.shape_cast %6 : vector<1x1x8x128xf32> to vector<8x128xf32>
    %8 = vector.shape_cast %5 : vector<8x128xf32> to vector<1x1x8x128xf32>
    tpu.vector_store %arg5[%c0_6, %c0_7, %c0_8, %c0_9], %8 {strides = array<i32>} : memref<1x4x8x128xf32, #tpu.memory_space<vmem>>, vector<1x1x8x128xf32>,
    %c0_10 = arith.constant 0 : index
    %c1 = arith.constant 1 : index
    %c0_11 = arith.constant 0 : index
    %c0_12 = arith.constant 0 : index
    %9 = vector.load %arg2[%c0_10, %c1, %c0_11, %c0_12] : memref<1x4x8x128xf32, #tpu.memory_space<vmem>>, vector<1x1x8x128xf32>
    %10 = vector.shape_cast %9 : vector<1x1x8x128xf32> to vector<8x128xf32>
    %c0_13 = arith.constant 0 : index
    %c1_14 = arith.constant 1 : index
    %c0_15 = arith.constant 0 : index
    %c0_16 = arith.constant 0 : index
    %11 = vector.load %arg5[%c0_13, %c1_14, %c0_15, %c0_16] : memref<1x4x8x128xf32, #tpu.memory_space<vmem>>, vector<1x1x8x128xf32>
    %12 = vector.shape_cast %11 : vector<1x1x8x128xf32> to vector<8x128xf32>
    %13 = vector.shape_cast %10 : vector<8x128xf32> to vector<1x1x8x128xf32>
    tpu.vector_store %arg5[%c0_13, %c1_14, %c0_15, %c0_16], %13 {strides = array<i32>} : memref<1x4x8x128xf32, #tpu.memory_space<vmem>>, vector<1x1x8x128xf32>,
    %c0_17 = arith.constant 0 : index
    %c2 = arith.constant 2 : index
    %c0_18 = arith.constant 0 : index
    %c0_19 = arith.constant 0 : index
    %14 = vector.load %arg2[%c0_17, %c2, %c0_18, %c0_19] : memref<1x4x8x128xf32, #tpu.memory_space<vmem>>, vector<1x1x8x128xf32>
    %15 = vector.shape_cast %14 : vector<1x1x8x128xf32> to vector<8x128xf32>
    %c0_20 = arith.constant 0 : index
    %c2_21 = arith.constant 2 : index
    %c0_22 = arith.constant 0 : index
    %c0_23 = arith.constant 0 : index
    %16 = vector.load %arg5[%c0_20, %c2_21, %c0_22, %c0_23] : memref<1x4x8x128xf32, #tpu.memory_space<vmem>>, vector<1x1x8x128xf32>
    %17 = vector.shape_cast %16 : vector<1x1x8x128xf32> to vector<8x128xf32>
    %18 = vector.shape_cast %15 : vector<8x128xf32> to vector<1x1x8x128xf32>
    tpu.vector_store %arg5[%c0_20, %c2_21, %c0_22, %c0_23], %18 {strides = array<i32>} : memref<1x4x8x128xf32, #tpu.memory_space<vmem>>, vector<1x1x8x128xf32>,
    %19 = arith.extui %3 : vector<8x128xi1> to vector<8x128xi32>
    %20 = arith.sitofp %19 : vector<8x128xi32> to vector<8x128xf32>
    %c0_24 = arith.constant 0 : index
    %c3_25 = arith.constant 3 : index
    %c0_26 = arith.constant 0 : index
    %c0_27 = arith.constant 0 : index
    %21 = vector.load %arg5[%c0_24, %c3_25, %c0_26, %c0_27] : memref<1x4x8x128xf32, #tpu.memory_space<vmem>>, vector<1x1x8x128xf32>
    %22 = vector.shape_cast %21 : vector<1x1x8x128xf32> to vector<8x128xf32>
    %23 = vector.shape_cast %20 : vector<8x128xf32> to vector<1x1x8x128xf32>
    tpu.vector_store %arg5[%c0_24, %c3_25, %c0_26, %c0_27], %23 {strides = array<i32>} : memref<1x4x8x128xf32, #tpu.memory_space<vmem>>, vector<1x1x8x128xf32>,
    %c0_28 = arith.constant 0 : index
    %24 = memref.load %arg4[%c0_28] : memref<1xf32, #tpu.memory_space<smem>>
    %c0_29 = arith.constant 0 : index
    %c2_30 = arith.constant 2 : index
    %c0_31 = arith.constant 0 : index
    %c0_32 = arith.constant 0 : index
    %25 = vector.load %arg2[%c0_29, %c2_30, %c0_31, %c0_32] : memref<1x4x8x128xf32, #tpu.memory_space<vmem>>, vector<1x1x8x128xf32>
    %26 = vector.shape_cast %25 : vector<1x1x8x128xf32> to vector<8x128xf32>
    %cst_33 = arith.constant 0.000000e+00 : f32
    %cst_34 = arith.constant 1.000000e+00 : f32
    %27 = vector.broadcast %cst_33 : f32 to vector<8x128xf32>
    %28 = arith.maximumf %27, %26 : vector<8x128xf32>
    %29 = vector.broadcast %cst_34 : f32 to vector<8x128xf32>
    %30 = arith.minimumf %29, %28 : vector<8x128xf32>
    %c0_35 = arith.constant 0 : index
    %c0_36 = arith.constant 0 : index
    %c0_37 = arith.constant 0 : index
    %c0_38 = arith.constant 0 : index
    %31 = vector.load %arg3[%c0_35, %c0_36, %c0_37, %c0_38] : memref<1x3x8x128xf32, #tpu.memory_space<vmem>>, vector<1x1x8x128xf32>
    %32 = vector.shape_cast %31 : vector<1x1x8x128xf32> to vector<8x128xf32>
    %33 = vector.broadcast %24 : f32 to vector<8x128xf32>
    %34 = arith.mulf %32, %33 : vector<8x128xf32>
    %35 = arith.select %3, %30, %34 : vector<8x128xi1>, vector<8x128xf32>
    %c0_39 = arith.constant 0 : index
    %c0_40 = arith.constant 0 : index
    %c0_41 = arith.constant 0 : index
    %c0_42 = arith.constant 0 : index
    %36 = vector.load %arg6[%c0_39, %c0_40, %c0_41, %c0_42] : memref<1x3x8x128xf32, #tpu.memory_space<vmem>>, vector<1x1x8x128xf32>
    %37 = vector.shape_cast %36 : vector<1x1x8x128xf32> to vector<8x128xf32>
    %38 = vector.shape_cast %35 : vector<8x128xf32> to vector<1x1x8x128xf32>
    tpu.vector_store %arg6[%c0_39, %c0_40, %c0_41, %c0_42], %38 {strides = array<i32>} : memref<1x3x8x128xf32, #tpu.memory_space<vmem>>, vector<1x1x8x128xf32>,
    %c0_43 = arith.constant 0 : index
    %c1_44 = arith.constant 1 : index
    %c0_45 = arith.constant 0 : index
    %c0_46 = arith.constant 0 : index
    %39 = vector.load %arg2[%c0_43, %c1_44, %c0_45, %c0_46] : memref<1x4x8x128xf32, #tpu.memory_space<vmem>>, vector<1x1x8x128xf32>
    %40 = vector.shape_cast %39 : vector<1x1x8x128xf32> to vector<8x128xf32>
    %cst_47 = arith.constant 0.000000e+00 : f32
    %cst_48 = arith.constant 1.000000e+00 : f32
    %41 = vector.broadcast %cst_47 : f32 to vector<8x128xf32>
    %42 = arith.maximumf %41, %40 : vector<8x128xf32>
    %43 = vector.broadcast %cst_48 : f32 to vector<8x128xf32>
    %44 = arith.minimumf %43, %42 : vector<8x128xf32>
    %c0_49 = arith.constant 0 : index
    %c1_50 = arith.constant 1 : index
    %c0_51 = arith.constant 0 : index
    %c0_52 = arith.constant 0 : index
    %45 = vector.load %arg3[%c0_49, %c1_50, %c0_51, %c0_52] : memref<1x3x8x128xf32, #tpu.memory_space<vmem>>, vector<1x1x8x128xf32>
    %46 = vector.shape_cast %45 : vector<1x1x8x128xf32> to vector<8x128xf32>
    %47 = vector.broadcast %24 : f32 to vector<8x128xf32>
    %48 = arith.mulf %46, %47 : vector<8x128xf32>
    %49 = arith.select %3, %44, %48 : vector<8x128xi1>, vector<8x128xf32>
    %c0_53 = arith.constant 0 : index
    %c1_54 = arith.constant 1 : index
    %c0_55 = arith.constant 0 : index
    %c0_56 = arith.constant 0 : index
    %50 = vector.load %arg6[%c0_53, %c1_54, %c0_55, %c0_56] : memref<1x3x8x128xf32, #tpu.memory_space<vmem>>, vector<1x1x8x128xf32>
    %51 = vector.shape_cast %50 : vector<1x1x8x128xf32> to vector<8x128xf32>
    %52 = vector.shape_cast %49 : vector<8x128xf32> to vector<1x1x8x128xf32>
    tpu.vector_store %arg6[%c0_53, %c1_54, %c0_55, %c0_56], %52 {strides = array<i32>} : memref<1x3x8x128xf32, #tpu.memory_space<vmem>>, vector<1x1x8x128xf32>,
    %c0_57 = arith.constant 0 : index
    %c0_58 = arith.constant 0 : index
    %c0_59 = arith.constant 0 : index
    %c0_60 = arith.constant 0 : index
    %53 = vector.load %arg2[%c0_57, %c0_58, %c0_59, %c0_60] : memref<1x4x8x128xf32, #tpu.memory_space<vmem>>, vector<1x1x8x128xf32>
    %54 = vector.shape_cast %53 : vector<1x1x8x128xf32> to vector<8x128xf32>
    %cst_61 = arith.constant 0.000000e+00 : f32
    %cst_62 = arith.constant 1.000000e+00 : f32
    %55 = vector.broadcast %cst_61 : f32 to vector<8x128xf32>
    %56 = arith.maximumf %55, %54 : vector<8x128xf32>
    %57 = vector.broadcast %cst_62 : f32 to vector<8x128xf32>
    %58 = arith.minimumf %57, %56 : vector<8x128xf32>
    %c0_63 = arith.constant 0 : index
    %c2_64 = arith.constant 2 : index
    %c0_65 = arith.constant 0 : index
    %c0_66 = arith.constant 0 : index
    %59 = vector.load %arg3[%c0_63, %c2_64, %c0_65, %c0_66] : memref<1x3x8x128xf32, #tpu.memory_space<vmem>>, vector<1x1x8x128xf32>
    %60 = vector.shape_cast %59 : vector<1x1x8x128xf32> to vector<8x128xf32>
    %61 = vector.broadcast %24 : f32 to vector<8x128xf32>
    %62 = arith.mulf %60, %61 : vector<8x128xf32>
    %63 = arith.select %3, %58, %62 : vector<8x128xi1>, vector<8x128xf32>
    %c0_67 = arith.constant 0 : index
    %c2_68 = arith.constant 2 : index
    %c0_69 = arith.constant 0 : index
    %c0_70 = arith.constant 0 : index
    %64 = vector.load %arg6[%c0_67, %c2_68, %c0_69, %c0_70] : memref<1x3x8x128xf32, #tpu.memory_space<vmem>>, vector<1x1x8x128xf32>
    %65 = vector.shape_cast %64 : vector<1x1x8x128xf32> to vector<8x128xf32>
    %66 = vector.shape_cast %63 : vector<8x128xf32> to vector<1x1x8x128xf32>
    tpu.vector_store %arg6[%c0_67, %c2_68, %c0_69, %c0_70], %66 {strides = array<i32>} : memref<1x3x8x128xf32, #tpu.memory_space<vmem>>, vector<1x1x8x128xf32>,
    return
  }
  func.func @transform_0(%arg0: i32, %arg1: i32) -> (i32, i32, i32, i32) {
    %c0_i32 = arith.constant 0 : i32
    %c0_i32_0 = arith.constant 0 : i32
    %c0_i32_1 = arith.constant 0 : i32
    return %arg0, %c0_i32, %arg1, %c0_i32_0 : i32, i32, i32, i32
  }
  func.func @transform_1(%arg0: i32, %arg1: i32) -> (i32, i32, i32, i32) {
    %c0_i32 = arith.constant 0 : i32
    %c0_i32_0 = arith.constant 0 : i32
    %c0_i32_1 = arith.constant 0 : i32
    return %arg0, %c0_i32, %arg1, %c0_i32_0 : i32, i32, i32, i32
  }
  func.func @transform_2(%arg0: i32, %arg1: i32) -> i32 {
    %c0_i32 = arith.constant 0 : i32
    %c0_i32_0 = arith.constant 0 : i32
    return %c0_i32 : i32
  }
  func.func @transform_3(%arg0: i32, %arg1: i32) -> (i32, i32, i32, i32) {
    %c0_i32 = arith.constant 0 : i32
    %c0_i32_0 = arith.constant 0 : i32
    %c0_i32_1 = arith.constant 0 : i32
    return %arg0, %c0_i32, %arg1, %c0_i32_0 : i32, i32, i32, i32
  }
  func.func @transform_4(%arg0: i32, %arg1: i32) -> (i32, i32, i32, i32) {
    %c0_i32 = arith.constant 0 : i32
    %c0_i32_0 = arith.constant 0 : i32
    %c0_i32_1 = arith.constant 0 : i32
    return %arg0, %c0_i32, %arg1, %c0_i32_0 : i32, i32, i32, i32
  }
}

</mosaic_0001>

<llo_original>
// kernel: tpu_custom_call.1
$region0: #{tpu_custom_call.1}
  #allocation0 [shape = 'u32[]', space=smem, size = 0x4, offset = 0x4, fixed_abs, tag = 'smem constant byte address 0x4 - core index']
  #allocation1 [shape = 'u32[72,128]{1,0:T(1,128)}', space=vmem, size = 0x9000, scoped, tag = 'internal scratch']
  #allocation2 [shape = 'f32[1]{0:T(128)S(6)}', space=smem, size = 0x200, scoped, tag = 'scoped memory for tpu_custom_call.1']
  %s0 = inlined_call_operand.hbm [shape: f32[2,4,16,128], index: 0, kind: input, shape index: {}]
  %s1 = inlined_call_operand.hbm [shape: f32[2,3,16,128], index: 1, kind: input, shape index: {}]
  %s2 = inlined_call_operand.<no memory space> [shape: f32[1], index: 2, kind: input, shape index: {}]
  %s3 = inlined_call_operand.hbm [shape: f32[2,4,16,128], index: 3, kind: output, shape index: {0}]
  %s4 = inlined_call_operand.hbm [shape: f32[2,3,16,128], index: 4, kind: output, shape index: {1}]
  %5 = xla_tuple %s3, %s4
  %s6 = sld [smem:[#allocation0]]
  $region61: #{tpu_custom_call.1} parent=0
    _
  %s8 = ssub.s32 1, %s6
  %s9 = scalar_select 0, %s8, %s6
  %10 = sst [smem:[#allocation2]] %s2
  $region1: #{tpu_custom_call.1} parent=0
    #allocation3 [shape = 'u8[32768]{0}', space=vmem, size = 0x8000, scoped, tag = 'input window, operand 0']
    #allocation4 [shape = 's32[2]{0}', space=sflag, size = 0x8, scoped, tag = 'scoped memory for tpu_custom_call.1']
    #allocation5 [shape = 's32[2]{0}', space=sflag, size = 0x8, scoped, tag = 'scoped memory for tpu_custom_call.1']
    #allocation6 [shape = 'u8[24576]{0}', space=vmem, size = 0x6000, scoped, tag = 'input window, operand 1']
    #allocation7 [shape = 's32[2]{0}', space=sflag, size = 0x8, scoped, tag = 'scoped memory for tpu_custom_call.1']
    #allocation8 [shape = 'u8[32768]{0}', space=vmem, size = 0x8000, scoped, tag = 'output window, operand 0']
    #allocation9 [shape = 'u8[24576]{0}', space=vmem, size = 0x6000, scoped, tag = 'output window, operand 1']
    #allocation10 [shape = 's32[2]{0}', space=sflag, size = 0x8, scoped, tag = 'scoped memory for tpu_custom_call.1']
    %11 = vsyncpa [#allocation4], 0
    %s12 = scalar_lea.sflag [#allocation4], 1
    %13 = vsyncpa %s12, 0
    %14 = vsyncpa [#allocation7], 0
    %s15 = scalar_lea.sflag [#allocation7], 1
    %16 = vsyncpa %s15, 0
    %17 = vsyncpa [#allocation5], 0
    %s18 = scalar_lea.sflag [#allocation5], 1
    %19 = vsyncpa %s18, 0
    %20 = vsyncpa [#allocation10], 0
    %s21 = scalar_lea.sflag [#allocation10], 1
    %22 = vsyncpa %s21, 0
    loop: start=0, step=1, limit=6
    $region2: #{tpu_custom_call.1} parent=1 // loop_pre_header
      _
    $region3: #{tpu_custom_call.1} parent=1 // loop_header
      %s24 = sphi 0, %s28
      %p25 = scmp.ge.s32.totalorder %s24, 6
      %s31 = sphi 0, %s43
      %s32 = sphi 0, %s39
      %s33 = sphi 0, %s31
      %s34 = sphi 0, %s32
      %s35 = sphi 0, %s33
      %s36 = sphi 0, %s34
      %s48 = sphi 0, %s50
      %s51 = sphi 0, %s48
      %s52 = sphi 0, %s51
      %s68 = sphi 0, %s52
      %s76 = sphi 0, %s78
      %s79 = sphi 0, %s76
      %s80 = sphi 0, %s79
      %s96 = sphi 0, %s80
      %s100 = sphi 0, %s100
      %s102 = sphi 0, %s100
      %s103 = sphi 0, %s102
      %s117 = sphi 0, %s103
      %s125 = sphi 0, %s127
      %s128 = sphi 0, %s125
      %s129 = sphi 0, %s128
      %s145 = sphi 0, %s129
      %s153 = sphi 0, %s155
      %s156 = sphi 0, %s153
      %s157 = sphi 0, %s156
      %s173 = sphi 0, %s157
    $region4: #{tpu_custom_call.1} parent=1 // loop_header_branch
      %27 = sbr.rel (%p25) target = $region8
    $region5: #{tpu_custom_call.1} parent=1 // loop_body
      %s29 = ssub.s32 %s24, 1
      %s30 = ssub.s32 %s24, 2
      %s37 = sadd.s32 1, %s32
      %p38 = scmp.ge.s32.totalorder %s37, 2
      %s39 = scalar_select %p38, 0, %s37
      %s40 = sadd.s32 1, %s31
      %s41 = scalar_select %p38, %s40, %s31
      %p42 = scmp.ge.s32.totalorder %s41, 2
      %s43 = scalar_select %p42, 0, %s41
      %s44 = ssub.s32 %s31, %s43
      %s45 = ssub.s32 %s32, %s39
      %s46 = sor.u32 %s44, %s45
      %p47 = scmp.eq.s32.totalorder %s46, 0
      %s49 = sadd.s32 %s48, 1
      %s50 = scalar_select %p47, %s48, %s49
      %p53 = pneg %p47
      %p54 = scmp.eq.s32.totalorder %s24, 3
      %p55 = por %p53, %p54
      %p56 = scmp.ne.s32.totalorder %s48, %s51
      %p57 = scmp.eq.s32.totalorder %s24, 0
      %p58 = por %p56, %p57
      %p59 = scmp.ne.s32.totalorder %s48, %s51
      %p60 = scmp.eq.s32.totalorder %s29, 3
      %p61 = por %p59, %p60
      %p62 = scmp.ne.s32.totalorder %s51, %s52
      %p63 = scmp.eq.s32.totalorder %s29, 0
      %p64 = por %p62, %p63
      %p65 = scmp.ne.s32.totalorder %s51, %s52
      %p66 = scmp.eq.s32.totalorder %s30, 3
      %p67 = por %p65, %p66
      %p69 = scmp.ne.s32.totalorder %s52, %s68
      %p70 = scmp.eq.s32.totalorder %s30, 0
      %p71 = por %p69, %p70
      %s72 = ssub.s32 %s31, %s43
      %s73 = ssub.s32 %s32, %s39
      %s74 = sor.u32 %s72, %s73
      %p75 = scmp.eq.s32.totalorder %s74, 0
      %s77 = sadd.s32 %s76, 1
      %s78 = scalar_select %p75, %s76, %s77
      %p81 = pneg %p75
      %p82 = scmp.eq.s32.totalorder %s24, 3
      %p83 = por %p81, %p82
      %p84 = scmp.ne.s32.totalorder %s76, %s79
      %p85 = scmp.eq.s32.totalorder %s24, 0
      %p86 = por %p84, %p85
      %p87 = scmp.ne.s32.totalorder %s76, %s79
      %p88 = scmp.eq.s32.totalorder %s29, 3
      %p89 = por %p87, %p88
      %p90 = scmp.ne.s32.totalorder %s79, %s80
      %p91 = scmp.eq.s32.totalorder %s29, 0
      %p92 = por %p90, %p91
      %p93 = scmp.ne.s32.totalorder %s79, %s80
      %p94 = scmp.eq.s32.totalorder %s30, 3
      %p95 = por %p93, %p94
      %p97 = scmp.ne.s32.totalorder %s80, %s96
      %p98 = scmp.eq.s32.totalorder %s30, 0
      %p99 = por %p97, %p98
      %s101 = sadd.s32 %s100, 1
      %p104 = scmp.eq.s32.totalorder %s24, 3
      %p105 = scmp.ne.s32.totalorder %s100, %s102
      %p106 = scmp.eq.s32.totalorder %s24, 0
      %p107 = por %p105, %p106
      %p108 = scmp.ne.s32.totalorder %s100, %s102
      %p109 = scmp.eq.s32.totalorder %s29, 3
      %p110 = por %p108, %p109
      %p111 = scmp.ne.s32.totalorder %s102, %s103
      %p112 = scmp.eq.s32.totalorder %s29, 0
      %p113 = por %p111, %p112
      %p114 = scmp.ne.s32.totalorder %s102, %s103
      %p115 = scmp.eq.s32.totalorder %s30, 3
      %p116 = por %p114, %p115
      %p118 = scmp.ne.s32.totalorder %s103, %s117
      %p119 = scmp.eq.s32.totalorder %s30, 0
      %p120 = por %p118, %p119
      %s121 = ssub.s32 %s31, %s43
      %s122 = ssub.s32 %s32, %s39
      %s123 = sor.u32 %s121, %s122
      %p124 = scmp.eq.s32.totalorder %s123, 0
      %s126 = sadd.s32 %s125, 1
      %s127 = scalar_select %p124, %s125, %s126
      %p130 = pneg %p124
      %p131 = scmp.eq.s32.totalorder %s24, 3
      %p132 = por %p130, %p131
      %p133 = scmp.ne.s32.totalorder %s125, %s128
      %p134 = scmp.eq.s32.totalorder %s24, 0
      %p135 = por %p133, %p134
      %p136 = scmp.ne.s32.totalorder %s125, %s128
      %p137 = scmp.eq.s32.totalorder %s29, 3
      %p138 = por %p136, %p137
      %p139 = scmp.ne.s32.totalorder %s128, %s129
      %p140 = scmp.eq.s32.totalorder %s29, 0
      %p141 = por %p139, %p140
      %p142 = scmp.ne.s32.totalorder %s128, %s129
      %p143 = scmp.eq.s32.totalorder %s30, 3
      %p144 = por %p142, %p143
      %p146 = scmp.ne.s32.totalorder %s129, %s145
      %p147 = scmp.eq.s32.totalorder %s30, 0
      %p148 = por %p146, %p147
      %s149 = ssub.s32 %s31, %s43
      %s150 = ssub.s32 %s32, %s39
      %s151 = sor.u32 %s149, %s150
      %p152 = scmp.eq.s32.totalorder %s151, 0
      %s154 = sadd.s32 %s153, 1
      %s155 = scalar_select %p152, %s153, %s154
      %p158 = pneg %p152
      %p159 = scmp.eq.s32.totalorder %s24, 3
      %p160 = por %p158, %p159
      %p161 = scmp.ne.s32.totalorder %s153, %s156
      %p162 = scmp.eq.s32.totalorder %s24, 0
      %p163 = por %p161, %p162
      %p164 = scmp.ne.s32.totalorder %s153, %s156
      %p165 = scmp.eq.s32.totalorder %s29, 3
      %p166 = por %p164, %p165
      %p167 = scmp.ne.s32.totalorder %s156, %s157
      %p168 = scmp.eq.s32.totalorder %s29, 0
      %p169 = por %p167, %p168
      %p170 = scmp.ne.s32.totalorder %s156, %s157
      %p171 = scmp.eq.s32.totalorder %s30, 3
      %p172 = por %p170, %p171
      %p174 = scmp.ne.s32.totalorder %s157, %s173
      %p175 = scmp.eq.s32.totalorder %s30, 0
      %p176 = por %p174, %p175
      %p177 = scmp.le.s32.totalorder 1, %s24
      %p178 = scmp.lt.s32.totalorder %s24, 5
      %p179 = pnand %p177, %p178
      %p180 = pneg %p179
      // Predicated region
      $region9: #{tpu_custom_call.1} parent=5 // pred_check
        _
      $region10: #{tpu_custom_call.1} parent=5 // pred_check_branch
        %182 = sbr.rel (%p179) target = $region12
      $region11: #{tpu_custom_call.1} parent=5 // pred_region
        %s183 = ssub.s32 %s24, 1
        // Predicated region
        $region13: #{tpu_custom_call.1} parent=11 // pred_check
          %p184 = pneg %p113
        $region14: #{tpu_custom_call.1} parent=11 // pred_check_branch
          %186 = sbr.rel (%p184) target = $region16
        $region15: #{tpu_custom_call.1} parent=11 // pred_region
          _
        $region16: #{tpu_custom_call.1} parent=11 // pred_fallthru
          _
      $region12: #{tpu_custom_call.1} parent=5 // pred_fallthru
        _
      %p187 = scmp.lt.s32.totalorder %s24, 4
      // Predicated region
      $region17: #{tpu_custom_call.1} parent=5 // pred_check
        %p188 = pneg %p187
      $region18: #{tpu_custom_call.1} parent=5 // pred_check_branch
        %190 = sbr.rel (%p188) target = $region20
      $region19: #{tpu_custom_call.1} parent=5 // pred_region
        // Predicated region
        $region21: #{tpu_custom_call.1} parent=19 // pred_check
          %p191 = pneg %p58
        $region22: #{tpu_custom_call.1} parent=19 // pred_check_branch
          %193 = sbr.rel (%p191) target = $region24
        $region23: #{tpu_custom_call.1} parent=19 // pred_region
          %s194 = sand.u32 %s48, 1
          %s195 = scalar_lea.sflag [#allocation4], %s194
          %s196 = sand.u32 %s48, 1
          %s197 = smul.addr %s196, 32
          %s198 = scalar_lea.vmem [#allocation3], %s197
          %200 = vsyncadd %s195, 0
          %s201 = smul.addr %s31, 8
          %s202 = sadd.s32 %s32, %s201
          %s203 = smul.addr %s202, 8
          %s204 = scalar_lea.hbm %s0, %s203
          %s205 = sshll.u32 %s204, 4
          %s206 = int_to_ptr.hbm [resolvable:$true] %s205
          %s207 = sshll.u32 %s198, 4
          %s208 = int_to_ptr.vmem [resolvable:$true] %s207
          %213 = dma.hbm_to_vmem [thread:$0]  %s206, 512, %s208, %s195, 256, 128, 8
        $region24: #{tpu_custom_call.1} parent=19 // pred_fallthru
          _
        // Predicated region
        $region25: #{tpu_custom_call.1} parent=19 // pred_check
          %p214 = pneg %p86
        $region26: #{tpu_custom_call.1} parent=19 // pred_check_branch
          %216 = sbr.rel (%p214) target = $region28
        $region27: #{tpu_custom_call.1} parent=19 // pred_region
          %s217 = sand.u32 %s76, 1
          %s218 = scalar_lea.sflag [#allocation7], %s217
          %s219 = sand.u32 %s76, 1
          %s220 = smul.addr %s219, 24
          %s221 = scalar_lea.vmem [#allocation6], %s220
          %223 = vsyncadd %s218, 0
          %s224 = smul.addr %s31, 6
          %s225 = sadd.s32 %s32, %s224
          %s226 = smul.addr %s225, 8
          %s227 = scalar_lea.hbm %s1, %s226
          %s228 = sshll.u32 %s227, 4
          %s229 = int_to_ptr.hbm [resolvable:$true] %s228
          %s230 = sshll.u32 %s221, 4
          %s231 = int_to_ptr.vmem [resolvable:$true] %s230
          %236 = dma.hbm_to_vmem [thread:$0]  %s229, 384, %s231, %s218, 256, 128, 8
        $region28: #{tpu_custom_call.1} parent=19 // pred_fallthru
          _
      $region20: #{tpu_custom_call.1} parent=5 // pred_fallthru
        _
      %p237 = scmp.le.s32.totalorder 1, %s24
      %p238 = scmp.lt.s32.totalorder %s24, 5
      %p239 = pnand %p237, %p238
      %p240 = pneg %p239
      // Predicated region
      $region29: #{tpu_custom_call.1} parent=5 // pred_check
        _
      $region30: #{tpu_custom_call.1} parent=5 // pred_check_branch
        %242 = sbr.rel (%p239) target = $region32
      $region31: #{tpu_custom_call.1} parent=5 // pred_region
        %s243 = ssub.s32 %s24, 1
        %s244 = sand.u32 %s51, 1
        %s245 = scalar_lea.sflag [#allocation4], %s244
        %s246 = sand.u32 %s51, 1
        %s247 = smul.addr %s246, 32
        %s248 = scalar_lea.vmem [#allocation3], %s247
        // Predicated region
        $region33: #{tpu_custom_call.1} parent=31 // pred_check
          %p249 = pneg %p64
        $region34: #{tpu_custom_call.1} parent=31 // pred_check_branch
          %251 = sbr.rel (%p249) target = $region36
        $region35: #{tpu_custom_call.1} parent=31 // pred_region
          %253 = dma.done %s245, 512
        $region36: #{tpu_custom_call.1} parent=31 // pred_fallthru
          _
        %s254 = sand.u32 %s79, 1
        %s255 = scalar_lea.sflag [#allocation7], %s254
        %s256 = sand.u32 %s79, 1
        %s257 = smul.addr %s256, 24
        %s258 = scalar_lea.vmem [#allocation6], %s257
        // Predicated region
        $region37: #{tpu_custom_call.1} parent=31 // pred_check
          %p259 = pneg %p92
        $region38: #{tpu_custom_call.1} parent=31 // pred_check_branch
          %261 = sbr.rel (%p259) target = $region40
        $region39: #{tpu_custom_call.1} parent=31 // pred_region
          %263 = dma.done %s255, 384
        $region40: #{tpu_custom_call.1} parent=31 // pred_fallthru
          _
        %s264 = sand.u32 %s51, 1
        %s265 = scalar_lea.sflag [#allocation4], %s264
        %s266 = sand.u32 %s51, 1
        %s267 = smul.addr %s266, 32
        %s268 = scalar_lea.vmem [#allocation3], %s267
        %p269 = pneg %p64
        %p270 = pneg %p61
        %s271 = sand.u32 %s79, 1
        %s272 = scalar_lea.sflag [#allocation7], %s271
        %s273 = sand.u32 %s79, 1
        %s274 = smul.addr %s273, 24
        %s275 = scalar_lea.vmem [#allocation6], %s274
        %p276 = pneg %p92
        %p277 = pneg %p89
        %p278 = pneg %p113
        %p279 = pneg %p110
        %p280 = pneg %p141
        %p281 = pneg %p138
        %s282 = sand.u32 %s128, 1
        %s283 = scalar_lea.sflag [#allocation5], %s282
        %s284 = sand.u32 %s128, 1
        %s285 = smul.addr %s284, 32
        %s286 = scalar_lea.vmem [#allocation8], %s285
        %p287 = pneg %p169
        %p288 = pneg %p166
        %s289 = sand.u32 %s156, 1
        %s290 = scalar_lea.sflag [#allocation10], %s289
        %s291 = sand.u32 %s156, 1
        %s292 = smul.addr %s291, 24
        %s293 = scalar_lea.vmem [#allocation9], %s292
        %s294 = scalar_lea.vmem %s248, 24 [#allocation3]
        %v295 = vld [vmem:[%s294] sm:$0xff]
        %vm296 = vcmp.gt.f32.partialorder %v295, 0.0
        %v297 = vld [vmem:[%s248] sm:$0xff]
        %298 = vst [vmem:[%s286] sm:$0xff] %v297
        %s299 = scalar_lea.vmem %s248, 8 [#allocation3]
        %v300 = vld [vmem:[%s299] sm:$0xff]
        %s301 = scalar_lea.vmem %s286, 8 [#allocation8]
        %302 = vst [vmem:[%s301] sm:$0xff] %v300
        %s303 = scalar_lea.vmem %s248, 16 [#allocation3]
        %v304 = vld [vmem:[%s303] sm:$0xff]
        %s305 = scalar_lea.vmem %s286, 16 [#allocation8]
        %306 = vst [vmem:[%s305] sm:$0xff] %v304
        %v307 = vsel %vm296, 1, 0
        %v308 = vcvt.s32.f32 %v307
        %s309 = scalar_lea.vmem %s286, 24 [#allocation8]
        %310 = vst [vmem:[%s309] sm:$0xff] %v308
        %s311 = sld [smem:[#allocation2]]
        %v312 = vld [vmem:[%s303] sm:$0xff]
        %v313 = vmax.f32 %v312, 0.0
        %v314 = vmin.f32 %v313, 1.0
        %v315 = vld [vmem:[%s258] sm:$0xff]
        %v316 = vstv %s311
        %v317 = vmul.f32 %v315, %v316
        %v318 = vsel %vm296, %v314, %v317
        %319 = vst [vmem:[%s293] sm:$0xff] %v318
        %v320 = vld [vmem:[%s299] sm:$0xff]
        %v321 = vmax.f32 %v320, 0.0
        %v322 = vmin.f32 %v321, 1.0
        %s323 = scalar_lea.vmem %s258, 8 [#allocation6]
        %v324 = vld [vmem:[%s323] sm:$0xff]
        %v325 = vmul.f32 %v324, %v316
        %v326 = vsel %vm296, %v322, %v325
        %s327 = scalar_lea.vmem %s293, 8 [#allocation9]
        %328 = vst [vmem:[%s327] sm:$0xff] %v326
        %v329 = vld [vmem:[%s248] sm:$0xff]
        %v330 = vmax.f32 %v329, 0.0
        %v331 = vmin.f32 %v330, 1.0
        %s332 = scalar_lea.vmem %s258, 16 [#allocation6]
        %v333 = vld [vmem:[%s332] sm:$0xff]
        %v334 = vmul.f32 %v333, %v316
        %v335 = vsel %vm296, %v331, %v334
        %s336 = scalar_lea.vmem %s293, 16 [#allocation9]
        %337 = vst [vmem:[%s336] sm:$0xff] %v335
        %s338 = sand.u32 %s128, 1
        %s339 = scalar_lea.sflag [#allocation5], %s338
        %s340 = sand.u32 %s128, 1
        %s341 = smul.addr %s340, 32
        %s342 = scalar_lea.vmem [#allocation8], %s341
        %s343 = sand.u32 %s156, 1
        %s344 = scalar_lea.sflag [#allocation10], %s343
        %s345 = sand.u32 %s156, 1
        %s346 = smul.addr %s345, 24
        %s347 = scalar_lea.vmem [#allocation9], %s346
        // Predicated region
        $region41: #{tpu_custom_call.1} parent=31 // pred_check
          %p348 = pneg %p138
        $region42: #{tpu_custom_call.1} parent=31 // pred_check_branch
          %350 = sbr.rel (%p348) target = $region44
        $region43: #{tpu_custom_call.1} parent=31 // pred_region
          %352 = vsyncadd %s339, 0
          %s353 = smul.addr %s33, 8
          %s354 = sadd.s32 %s34, %s353
          %s355 = smul.addr %s354, 8
          %s356 = scalar_lea.hbm %s3, %s355
          %s357 = sshll.u32 %s342, 4
          %s358 = int_to_ptr.vmem [resolvable:$true] %s357
          %s359 = sshll.u32 %s356, 4
          %s360 = int_to_ptr.hbm [resolvable:$true] %s359
          %365 = dma.vmem_to_hbm [thread:$0]  %s358, 512, %s360, %s339, 128, 256, 8
        $region44: #{tpu_custom_call.1} parent=31 // pred_fallthru
          _
        // Predicated region
        $region45: #{tpu_custom_call.1} parent=31 // pred_check
          %p366 = pneg %p166
        $region46: #{tpu_custom_call.1} parent=31 // pred_check_branch
          %368 = sbr.rel (%p366) target = $region48
        $region47: #{tpu_custom_call.1} parent=31 // pred_region
          %370 = vsyncadd %s344, 0
          %s371 = smul.addr %s33, 6
          %s372 = sadd.s32 %s34, %s371
          %s373 = smul.addr %s372, 8
          %s374 = scalar_lea.hbm %s4, %s373
          %s375 = sshll.u32 %s347, 4
          %s376 = int_to_ptr.vmem [resolvable:$true] %s375
          %s377 = sshll.u32 %s374, 4
          %s378 = int_to_ptr.hbm [resolvable:$true] %s377
          %383 = dma.vmem_to_hbm [thread:$0]  %s376, 384, %s378, %s344, 128, 256, 8
        $region48: #{tpu_custom_call.1} parent=31 // pred_fallthru
          _
      $region32: #{tpu_custom_call.1} parent=5 // pred_fallthru
        _
      %p384 = scmp.le.s32.totalorder 2, %s24
      // Predicated region
      $region49: #{tpu_custom_call.1} parent=5 // pred_check
        %p385 = pneg %p384
      $region50: #{tpu_custom_call.1} parent=5 // pred_check_branch
        %387 = sbr.rel (%p385) target = $region52
      $region51: #{tpu_custom_call.1} parent=5 // pred_region
        %s388 = ssub.s32 %s24, 2
        // Predicated region
        $region53: #{tpu_custom_call.1} parent=51 // pred_check
          %p389 = pneg %p144
        $region54: #{tpu_custom_call.1} parent=51 // pred_check_branch
          %391 = sbr.rel (%p389) target = $region56
        $region55: #{tpu_custom_call.1} parent=51 // pred_region
          %s392 = sand.u32 %s129, 1
          %s393 = scalar_lea.sflag [#allocation5], %s392
          %s394 = sand.u32 %s129, 1
          %s395 = smul.addr %s394, 32
          %s396 = scalar_lea.vmem [#allocation8], %s395
          %398 = dma.done %s393, 512
        $region56: #{tpu_custom_call.1} parent=51 // pred_fallthru
          _
        // Predicated region
        $region57: #{tpu_custom_call.1} parent=51 // pred_check
          %p399 = pneg %p172
        $region58: #{tpu_custom_call.1} parent=51 // pred_check_branch
          %401 = sbr.rel (%p399) target = $region60
        $region59: #{tpu_custom_call.1} parent=51 // pred_region
          %s402 = sand.u32 %s157, 1
          %s403 = scalar_lea.sflag [#allocation10], %s402
          %s404 = sand.u32 %s157, 1
          %s405 = smul.addr %s404, 24
          %s406 = scalar_lea.vmem [#allocation9], %s405
          %408 = dma.done %s403, 384
        $region60: #{tpu_custom_call.1} parent=51 // pred_fallthru
          _
      $region52: #{tpu_custom_call.1} parent=5 // pred_fallthru
        _
    $region6: #{tpu_custom_call.1} parent=1 // loop_footer
      %s28 = sadd.s32 1, %s24
    $region7: #{tpu_custom_call.1} parent=1 // loop_footer_branch
      %23 = sbr.rel target = $region3
    $region8: #{tpu_custom_call.1} parent=1 // loop_exit
      _
    %409 = vsyncpa [#allocation4], 1
    %s410 = scalar_lea.sflag [#allocation4], 1
    %411 = vsyncpa %s410, 1
    %412 = vsyncpa [#allocation7], 1
    %s413 = scalar_lea.sflag [#allocation7], 1
    %414 = vsyncpa %s413, 1
    %415 = vsyncpa [#allocation5], 1
    %s416 = scalar_lea.sflag [#allocation5], 1
    %417 = vsyncpa %s416, 1
    %418 = vsyncpa [#allocation10], 1
    %s419 = scalar_lea.sflag [#allocation10], 1
    %420 = vsyncpa %s419, 1

</llo_original>
